<compile_context>
chip_gen: v6e
topology: v6e:2x2x1
jax: 0.10.0
libtpu: 0.0.40
codegen_flags: <defaults>
</compile_context>

<pallas_src>
import math
import jax
import jax.numpy as jnp
from jax.experimental import pallas as pl
from jax.experimental.pallas import tpu as pltpu

_INV_SQRT2 = 1.0 / math.sqrt(2.0)


def _mlp_kernel_f32out(x_ref, w1_ref, b1_ref, w2_ref, b2_ref, o_ref):
    """Per-(row-tile, H-chunk) MLP step; accumulates lin2 partials into o_ref (f32)."""
    h_idx = pl.program_id(1)

    @pl.when(h_idx == 0)
    def _init():
        o_ref[...] = jnp.zeros_like(o_ref)

    # lin1 partial over this H-chunk (bf16 MXU, f32 accumulate) + bias chunk.
    h = jnp.dot(x_ref[...], w1_ref[...], preferred_element_type=jnp.float32)
    h = h + b1_ref[...]
    # tanh-GELU: lowers to the EUP (separate VLIW slot), ~free under the MXU.
    # TODO(synk): switch back to exact erf GELU if bit-parity with nn.GELU
    # (exact, default) is mandatory.
    h = jax.nn.gelu(h, approximate=True)
    # lin2 partial contribution, f32 accumulation in the resident output block.
    o_ref[...] += jnp.dot(h.astype(w2_ref.dtype), w2_ref[...],
                          preferred_element_type=jnp.float32)

    @pl.when(h_idx == pl.num_programs(1) - 1)
    def _finalize():
        o_ref[...] += b2_ref[...]


def _mlp_kernel_acc(x_ref, w1_ref, b1_ref, w2_ref, b2_ref, o_ref, acc_ref):
    """Same as above but with an f32 scratch accumulator (for non-f32 outputs)."""
    h_idx = pl.program_id(1)

    @pl.when(h_idx == 0)
    def _init():
        acc_ref[...] = jnp.zeros_like(acc_ref)

    h = jnp.dot(x_ref[...], w1_ref[...], preferred_element_type=jnp.float32)
    h = h + b1_ref[...]
    h = jax.nn.gelu(h, approximate=True)
    acc_ref[...] += jnp.dot(h.astype(w2_ref.dtype), w2_ref[...],
                            preferred_element_type=jnp.float32)

    @pl.when(h_idx == pl.num_programs(1) - 1)
    def _finalize():
        o_ref[...] = (acc_ref[...] + b2_ref[...]).astype(o_ref.dtype)


def _round_up(a, b):
    return (a + b - 1) // b * b


def _device_caps():
    """Per-generation tiling / VMEM defaults (conservative when unknown)."""
    kind = ""
    try:
        kind = jax.devices()[0].device_kind.lower()
    except Exception:
        pass
    is_v7 = ("v7" in kind) or ("7x" in kind)
    if is_v7 or kind == "":
        # v7x: 64 MiB physical VMEM per TC (leave headroom), 2 TensorCores/chip.
        return dict(vmem_cap=56 * 1024 * 1024, default_tm=512, split_rows=True)
    # v5e / v6e: 128 MiB VMEM, single TensorCore.
    return dict(vmem_cap=100 * 1024 * 1024, default_tm=1024, split_rows=False)


def _pick_hidden_tile(H, tk_max):
    """Largest lane-dense (multiple-of-128) divisor of H that is <= tk_max."""
    if H <= tk_max:
        return H
    t = (tk_max // 128) * 128
    while t >= 128:
        if H % t == 0:
            return t
        t -= 128
    return 0  # no clean divisor -> caller falls back to padding


def mlp_block(x, w1, b1, w2, b2, *, tm=None, tk_h=512, compute_dtype=jnp.bfloat16):
    """MLPBlock forward.  x: (B,S,E); w1: (E,H); b1: (H,); w2: (H,E); b2: (E,)."""
    B, S, E = x.shape
    H = w1.shape[1]
    N = B * S
    out_dtype = x.dtype

    caps = _device_caps()
    if tm is None:
        tm = caps["default_tm"]

    # bf16 matmuls on the MXU: cast activations and weights, keep f32 biases,
    # f32 dot accumulation, and f32 (output-dtype) writeback.
    x2d = x.reshape(N, E).astype(compute_dtype)
    w1c = w1.astype(compute_dtype)
    w2c = w2.astype(compute_dtype)
    b1f = b1.astype(jnp.float32)
    b2f = b2.astype(jnp.float32)

    # --- row tiling (sublane granularity: 16 for 2-byte dtypes, 8 for f32) ---
    gran = 16 if jnp.dtype(compute_dtype).itemsize == 2 else 8
    tm_e = min(tm, _round_up(N, gran))
    if caps["split_rows"] and N >= 2 * gran:
        # v7x has 2 TensorCores: give the "parallel" row axis >= 2 blocks.
        tm_e = min(tm_e, _round_up(-(-N // 2), gran))
    N_pad = _round_up(N, tm_e)
    if N_pad != N:
        x2d = jnp.pad(x2d, ((0, N_pad - N), (0, 0)))

    # --- hidden-dim tiling: divisor of H preferred (no weight padding) ---
    tk = _pick_hidden_tile(H, tk_h)
    H_pad = H
    if tk == 0:
        # Fallback for awkward H: zero-padded w2 rows null padded-H contributions.
        tk = max(128, (tk_h // 128) * 128)
        H_pad = _round_up(H, tk)
        w1c = jnp.pad(w1c, ((0, 0), (0, H_pad - H)))
        b1f = jnp.pad(b1f, (0, H_pad - H))
        w2c = jnp.pad(w2c, ((0, H_pad - H), (0, 0)))

    b1_2d = b1f.reshape(1, H_pad)
    b2_2d = b2f.reshape(1, E)

    grid = (N_pad // tm_e, H_pad // tk)

    wbytes = jnp.dtype(compute_dtype).itemsize
    obytes = jnp.dtype(out_dtype).itemsize
    use_acc_scratch = out_dtype != jnp.float32

    # VMEM footprint: double-buffered inputs/outputs + (TM,TK) f32 hidden/GELU
    # temporary (+ f32 acc scratch for non-f32 outputs), with 1.5x headroom,
    # clamped to the per-generation cap.
    vmem_bytes = (
        2 * tm_e * E * wbytes       # x blocks
        + 2 * E * tk * wbytes       # w1 chunks
        + 2 * tk * 4                # b1 chunks
        + 2 * tk * E * wbytes       # w2 chunks
        + 2 * E * 4                 # b2
        + 2 * tm_e * E * obytes     # output blocks
        + 2 * tm_e * tk * 4         # hidden/GELU f32 temporary
        + (tm_e * E * 4 if use_acc_scratch else 0)
    )
    vmem_limit = min(max(int(vmem_bytes * 1.5), 32 * 1024 * 1024),
                     caps["vmem_cap"])

    in_specs = [
        pl.BlockSpec((tm_e, E), lambda i, h: (i, 0)),   # x rows
        pl.BlockSpec((E, tk), lambda i, h: (0, h)),     # w1 H-chunk
        pl.BlockSpec((1, tk), lambda i, h: (0, h)),     # b1 H-chunk
        pl.BlockSpec((tk, E), lambda i, h: (h, 0)),     # w2 H-chunk
        pl.BlockSpec((1, E), lambda i, h: (0, 0)),      # b2
    ]
    # TODO(synk): on v5e, set pipeline_mode=pl.Buffered(3) on the w1/w2 specs to
    # hide the weight-stream DMA (lowest HBM bandwidth); VMEM headroom permits.

    kernel = _mlp_kernel_acc if use_acc_scratch else _mlp_kernel_f32out
    scratch = [pltpu.VMEM((tm_e, E), jnp.float32)] if use_acc_scratch else []

    out2d = pl.pallas_call(
        kernel,
        out_shape=jax.ShapeDtypeStruct((N_pad, E), out_dtype),
        grid_spec=pltpu.PrefetchScalarGridSpec(
            num_scalar_prefetch=0,
            grid=grid,
            in_specs=in_specs,
            out_specs=pl.BlockSpec((tm_e, E), lambda i, h: (i, 0)),
            scratch_shapes=scratch,
        ),
        compiler_params=pltpu.CompilerParams(
            dimension_semantics=("parallel", "arbitrary"),
            vmem_limit_bytes=vmem_limit,
        ),
    )(x2d, w1c, b1_2d, w2c, b2_2d)

    if N_pad != N:
        out2d = out2d[:N]
    return out2d.reshape(B, S, E)


def _reference(x, w1, b1, w2, b2):
    # Exact (erf) GELU in f32, matching nn.GELU's default.
    h = x @ w1 + b1
    h = 0.5 * h * (1.0 + jax.lax.erf(h * jnp.float32(_INV_SQRT2)))
    return h @ w2 + b2


def _make_params(key, E, H):
    k1, k2, k3, k4 = jax.random.split(key, 4)
    bound1 = 1.0 / math.sqrt(E)
    bound2 = 1.0 / math.sqrt(H)
    w1 = jax.random.uniform(k1, (E, H), jnp.float32, -bound1, bound1)
    b1 = jax.random.uniform(k2, (H,), jnp.float32, -bound1, bound1)
    w2 = jax.random.uniform(k3, (H, E), jnp.float32, -bound2, bound2)
    b2 = jax.random.uniform(k4, (E,), jnp.float32, -bound2, bound2)
    return w1, b1, w2, b2


if __name__ == "__main__":
    key = jax.random.PRNGKey(0)
    kx1, kp1, kx2, kp2 = jax.random.split(key, 4)

    # --- test 1: small SAM-like shapes (single H step, small row tile) ---
    B, S, E, H = 2, 8, 32, 64
    x = jax.random.normal(kx1, (B, S, E), dtype=jnp.float32)
    w1, b1, w2, b2 = _make_params(kp1, E, H)
    out = jax.block_until_ready(mlp_block(x, w1, b1, w2, b2))
    ref = _reference(x, w1, b1, w2, b2)
    assert out.shape == (B, S, E)
    # bf16 matmuls + tanh-GELU vs exact f32 reference -> loose tolerance.
    assert jnp.allclose(out, ref, atol=3e-2, rtol=3e-2), "mismatch vs reference (test 1)"

    # --- test 2: exercises H-axis accumulation + row padding path ---
    B, S, E, H = 5, 8, 128, 256
    x = jax.random.normal(kx2, (B, S, E), dtype=jnp.float32)
    w1, b1, w2, b2 = _make_params(kp2, E, H)
    out = jax.block_until_ready(mlp_block(x, w1, b1, w2, b2, tk_h=128))
    ref = _reference(x, w1, b1, w2, b2)
    assert out.shape == (B, S, E)
    assert jnp.allclose(out, ref, atol=3e-2, rtol=3e-2), "mismatch vs reference (test 2)"

    print("KERNEL_OK")
</pallas_src>

<mosaic_0001>
module attributes {stable_mosaic.version = 11 : i64} {
  func.func @_mlp_kernel_f32out(%arg0: i32, %arg1: i32, %arg2: memref<16x32xbf16, #tpu.memory_space<vmem>>, %arg3: memref<32x64xbf16, #tpu.memory_space<vmem>>, %arg4: memref<1x64xf32, #tpu.memory_space<vmem>>, %arg5: memref<64x32xbf16, #tpu.memory_space<vmem>>, %arg6: memref<1x32xf32, #tpu.memory_space<vmem>>, %arg7: memref<16x32xf32, #tpu.memory_space<vmem>>) attributes {dimension_semantics = [#tpu.dimension_semantics<parallel>, #tpu.dimension_semantics<arbitrary>], iteration_bounds = array<i64: 1, 1>, scalar_prefetch = 0 : i64, scratch_operands = 0 : i64, tpu.core_type = #tpu.core_type<tc>, window_params = [{transform_indices = @transform_0, window_bounds = array<i64: 16, 32>}, {transform_indices = @transform_1, window_bounds = array<i64: 32, 64>}, {transform_indices = @transform_2, window_bounds = array<i64: 1, 64>}, {transform_indices = @transform_3, window_bounds = array<i64: 64, 32>}, {pipeline_mode = #tpu.pipeline_mode<synchronous>, transform_indices = @transform_4, window_bounds = array<i64: 1, 32>}, {transform_indices = @transform_5, window_bounds = array<i64: 16, 32>}]} {
    %c0_i32 = arith.constant 0 : i32
    %0 = arith.cmpi eq, %arg1, %c0_i32 : i32
    %1 = arith.extui %0 : i1 to i32
    %c0_i32_0 = arith.constant 0 : i32
    %2 = arith.cmpi ne, %1, %c0_i32_0 : i32
    scf.if %2 {
      %cst_19 = arith.constant 0.000000e+00 : f32
      %31 = vector.broadcast %cst_19 : f32 to vector<16x32xf32>
      %c0_20 = arith.constant 0 : index
      %c0_21 = arith.constant 0 : index
      %32 = vector.load %arg7[%c0_20, %c0_21] : memref<16x32xf32, #tpu.memory_space<vmem>>, vector<16x32xf32>
      tpu.vector_store %arg7[%c0_20, %c0_21], %31 {strides = array<i32>} : memref<16x32xf32, #tpu.memory_space<vmem>>, vector<16x32xf32>,
    } else {
    }
    %c0 = arith.constant 0 : index
    %c0_1 = arith.constant 0 : index
    %3 = vector.load %arg2[%c0, %c0_1] : memref<16x32xbf16, #tpu.memory_space<vmem>>, vector<16x32xbf16>
    %c0_2 = arith.constant 0 : index
    %c0_3 = arith.constant 0 : index
    %4 = vector.load %arg3[%c0_2, %c0_3] : memref<32x64xbf16, #tpu.memory_space<vmem>>, vector<32x64xbf16>
    %cst = arith.constant dense<0.000000e+00> : vector<16x64xf32>
    %5 = tpu.matmul %3, %4, %cst {dimension_numbers = #tpu.dot_dimension_numbers<[1], [0], [0], [1], [0, 0, 1, 1], [], []>} : vector<16x32xbf16>, vector<32x64xbf16>, vector<16x64xf32> -> vector<16x64xf32>
    %c0_4 = arith.constant 0 : index
    %c0_5 = arith.constant 0 : index
    %6 = vector.load %arg4[%c0_4, %c0_5] : memref<1x64xf32, #tpu.memory_space<vmem>>, vector<1x64xf32>
    %7 = vector.broadcast %6 : vector<1x64xf32> to vector<16x64xf32>
    %8 = arith.addf %5, %7 : vector<16x64xf32>
    %9 = arith.mulf %8, %8 : vector<16x64xf32>
    %10 = arith.mulf %8, %9 : vector<16x64xf32>
    %cst_6 = arith.constant 4.471500e-02 : f32
    %11 = vector.broadcast %cst_6 : f32 to vector<16x64xf32>
    %12 = arith.mulf %11, %10 : vector<16x64xf32>
    %13 = arith.addf %8, %12 : vector<16x64xf32>
    %cst_7 = arith.constant 0.797884583 : f32
    %14 = vector.broadcast %cst_7 : f32 to vector<16x64xf32>
    %15 = arith.mulf %14, %13 : vector<16x64xf32>
    %16 = math.tanh %15 : vector<16x64xf32>
    %cst_8 = arith.constant 1.000000e+00 : f32
    %17 = vector.broadcast %cst_8 : f32 to vector<16x64xf32>
    %18 = arith.addf %17, %16 : vector<16x64xf32>
    %cst_9 = arith.constant 5.000000e-01 : f32
    %19 = vector.broadcast %cst_9 : f32 to vector<16x64xf32>
    %20 = arith.mulf %19, %18 : vector<16x64xf32>
    %21 = arith.mulf %8, %20 : vector<16x64xf32>
    %c0_10 = arith.constant 0 : index
    %c0_11 = arith.constant 0 : index
    %22 = vector.load %arg7[%c0_10, %c0_11] : memref<16x32xf32, #tpu.memory_space<vmem>>, vector<16x32xf32>
    %23 = arith.truncf %21 : vector<16x64xf32> to vector<16x64xbf16>
    %c0_12 = arith.constant 0 : index
    %c0_13 = arith.constant 0 : index
    %24 = vector.load %arg5[%c0_12, %c0_13] : memref<64x32xbf16, #tpu.memory_space<vmem>>, vector<64x32xbf16>
    %cst_14 = arith.constant dense<0.000000e+00> : vector<16x32xf32>
    %25 = tpu.matmul %23, %24, %cst_14 {dimension_numbers = #tpu.dot_dimension_numbers<[1], [0], [0], [1], [0, 0, 1, 1], [], []>} : vector<16x64xbf16>, vector<64x32xbf16>, vector<16x32xf32> -> vector<16x32xf32>
    %26 = arith.addf %22, %25 : vector<16x32xf32>
    %c0_15 = arith.constant 0 : index
    %c0_16 = arith.constant 0 : index
    %27 = vector.load %arg7[%c0_15, %c0_16] : memref<16x32xf32, #tpu.memory_space<vmem>>, vector<16x32xf32>
    tpu.vector_store %arg7[%c0_15, %c0_16], %26 {strides = array<i32>} : memref<16x32xf32, #tpu.memory_space<vmem>>, vector<16x32xf32>,
    %c0_i32_17 = arith.constant 0 : i32
    %28 = arith.cmpi eq, %arg1, %c0_i32_17 : i32
    %29 = arith.extui %28 : i1 to i32
    %c0_i32_18 = arith.constant 0 : i32
    %30 = arith.cmpi ne, %29, %c0_i32_18 : i32
    scf.if %30 {
      %c0_19 = arith.constant 0 : index
      %c0_20 = arith.constant 0 : index
      %31 = vector.load %arg7[%c0_19, %c0_20] : memref<16x32xf32, #tpu.memory_space<vmem>>, vector<16x32xf32>
      %c0_21 = arith.constant 0 : index
      %c0_22 = arith.constant 0 : index
      %32 = vector.load %arg6[%c0_21, %c0_22] : memref<1x32xf32, #tpu.memory_space<vmem>>, vector<1x32xf32>
      %33 = vector.broadcast %32 : vector<1x32xf32> to vector<16x32xf32>
      %34 = arith.addf %31, %33 : vector<16x32xf32>
      %c0_23 = arith.constant 0 : index
      %c0_24 = arith.constant 0 : index
      %35 = vector.load %arg7[%c0_23, %c0_24] : memref<16x32xf32, #tpu.memory_space<vmem>>, vector<16x32xf32>
      tpu.vector_store %arg7[%c0_23, %c0_24], %34 {strides = array<i32>} : memref<16x32xf32, #tpu.memory_space<vmem>>, vector<16x32xf32>,
    } else {
    }
    return
  }
  func.func @transform_0(%arg0: i32, %arg1: i32) -> (i32, i32) {
    %c0_i32 = arith.constant 0 : i32
    %c0_i32_0 = arith.constant 0 : i32
    return %arg0, %c0_i32 : i32, i32
  }
  func.func @transform_1(%arg0: i32, %arg1: i32) -> (i32, i32) {
    %c0_i32 = arith.constant 0 : i32
    %c0_i32_0 = arith.constant 0 : i32
    return %c0_i32, %arg1 : i32, i32
  }
  func.func @transform_2(%arg0: i32, %arg1: i32) -> (i32, i32) {
    %c0_i32 = arith.constant 0 : i32
    %c0_i32_0 = arith.constant 0 : i32
    return %c0_i32, %arg1 : i32, i32
  }
  func.func @transform_3(%arg0: i32, %arg1: i32) -> (i32, i32) {
    %c0_i32 = arith.constant 0 : i32
    %c0_i32_0 = arith.constant 0 : i32
    return %arg1, %c0_i32 : i32, i32
  }
  func.func @transform_4(%arg0: i32, %arg1: i32) -> (i32, i32) {
    %c0_i32 = arith.constant 0 : i32
    %c0_i32_0 = arith.constant 0 : i32
    %c0_i32_1 = arith.constant 0 : i32
    return %c0_i32, %c0_i32_0 : i32, i32
  }
  func.func @transform_5(%arg0: i32, %arg1: i32) -> (i32, i32) {
    %c0_i32 = arith.constant 0 : i32
    %c0_i32_0 = arith.constant 0 : i32
    return %arg0, %c0_i32 : i32, i32
  }
}

</mosaic_0001>

<llo_original>
// kernel: tpu_custom_call.1
$region0: #{tpu_custom_call.1}
  #allocation0 [shape = 'u32[]', space=smem, size = 0x4, offset = 0x4, fixed_abs, tag = 'smem constant byte address 0x4 - core index']
  #allocation1 [shape = 'u32[144,128]{1,0:T(1,128)}', space=vmem, size = 0x12000, scoped, tag = 'internal scratch']
  %s0 = inlined_call_operand.vmem [shape: bf16[16,32], index: 0, kind: input, shape index: {}]
  %s1 = inlined_call_operand.vmem [shape: bf16[32,64], index: 1, kind: input, shape index: {}]
  %s2 = inlined_call_operand.vmem [shape: f32[1,64], index: 2, kind: input, shape index: {}]
  %s3 = inlined_call_operand.vmem [shape: bf16[64,32], index: 3, kind: input, shape index: {}]
  %s4 = inlined_call_operand.vmem [shape: f32[1,32], index: 4, kind: input, shape index: {}]
  %s5 = inlined_call_operand.hbm [shape: f32[16,32], index: 5, kind: output, shape index: {}]
  %s6 = sld [smem:[#allocation0]]
  $region38: #{tpu_custom_call.1} parent=0
    _
  %s8 = ssub.s32 1, %s6
  %s9 = scalar_select 0, %s8, %s6
  $region1: #{tpu_custom_call.1} parent=0
    #allocation2 [shape = 'u8[8192]{0}', space=vmem, size = 0x2000, scoped, tag = 'output window, operand 0, single buffered']
    #allocation3 [shape = 's32[1]{0}', space=sflag, size = 0x4, scoped, tag = 'scoped memory for tpu_custom_call.1']
    %10 = vsyncpa [#allocation3], 0
    // Predicated region
    $region2: #{tpu_custom_call.1} parent=1 // pred_check
      _
    $region3: #{tpu_custom_call.1} parent=1 // pred_check_branch
      %12 = sbr.rel (0) target = $region5
    $region4: #{tpu_custom_call.1} parent=1 // pred_region
      _
    $region5: #{tpu_custom_call.1} parent=1 // pred_fallthru
      _
    // Predicated region
    $region6: #{tpu_custom_call.1} parent=1 // pred_check
      _
    $region7: #{tpu_custom_call.1} parent=1 // pred_check_branch
      %14 = sbr.rel (0) target = $region9
    $region8: #{tpu_custom_call.1} parent=1 // pred_region
      _
    $region9: #{tpu_custom_call.1} parent=1 // pred_fallthru
      _
    // Predicated region
    $region10: #{tpu_custom_call.1} parent=1 // pred_check
      _
    $region11: #{tpu_custom_call.1} parent=1 // pred_check_branch
      %16 = sbr.rel (0) target = $region13
    $region12: #{tpu_custom_call.1} parent=1 // pred_region
      _
    $region13: #{tpu_custom_call.1} parent=1 // pred_fallthru
      _
    // Predicated region
    $region14: #{tpu_custom_call.1} parent=1 // pred_check
      _
    $region15: #{tpu_custom_call.1} parent=1 // pred_check_branch
      %18 = sbr.rel (0) target = $region17
    $region16: #{tpu_custom_call.1} parent=1 // pred_region
      _
    $region17: #{tpu_custom_call.1} parent=1 // pred_fallthru
      _
    // Predicated region
    $region18: #{tpu_custom_call.1} parent=1 // pred_check
      _
    $region19: #{tpu_custom_call.1} parent=1 // pred_check_branch
      %20 = sbr.rel (0) target = $region21
    $region20: #{tpu_custom_call.1} parent=1 // pred_region
      _
    $region21: #{tpu_custom_call.1} parent=1 // pred_fallthru
      _
    %p22 = scmp.eq.s32.totalorder 0, 0
    // Predicated region
    $region22: #{tpu_custom_call.1} parent=1 // pred_check
      %p23 = pneg %p22
    $region23: #{tpu_custom_call.1} parent=1 // pred_check_branch
      %25 = sbr.rel (%p23) target = $region25
    $region24: #{tpu_custom_call.1} parent=1 // pred_region
      %vm26 = vcmask 261120
      %27 = vst.msk [vmem:[#allocation2] sm:$0xff] %vm26, 0.0
      %28 = vst.msk [vmem:[#allocation2 + $0x8] sm:$0xff] %vm26, 0.0
    $region25: #{tpu_custom_call.1} parent=1 // pred_fallthru
      _
    %v29 = vld [vmem:[%s0] sm:$0xf]
    %v30 = vld [vmem:[%s0 + $0x4] sm:$0xf]
    %v31 = vld [vmem:[%s1] sm:$0xf]
    %v32 = vld [vmem:[%s1 + $0x4] sm:$0xf]
    %v33 = vld [vmem:[%s1 + $0x8] sm:$0xf]
    %v34 = vld [vmem:[%s1 + $0xc] sm:$0xf]
    %v35 = vld [vmem:[%s2] sm:$0x1]
    %v37 = vlaneseq
    %v38 = vshrl.u32 %v37, 7
    %v39 = vsub.s32 0, %v38
    %v40 = vrot.slane %v35, %v39
    %v44 = vunpack.c.l.b16 %v29
    %v45 = vunpack.c.l.b16 %v30
    %v46 = vpack.c.b16 %v45, %v44
    %v51 = vunpack.c.l.b16 %v31
    %v52 = vunpack.c.l.b16 %v32
    %v53 = vunpack.c.l.b16 %v33
    %v54 = vunpack.c.l.b16 %v34
    %v55 = vpack.c.b16 %v52, %v51
    %v56 = vpack.c.b16 %v54, %v53
    %vm59 = vcmask 261120
    %v61 = vsel %vm59, %v46, 0
    %63 = vmatprep.subr.bf16.mxu0 0
    %64 = vmatpush1.bf16.msra.mxu0 0
    %65 = vmatprep.subr.bf16.mxu0 0
    %66 = vmatpush1.bf16.msra.mxu0 0
    %67 = vmatprep.subr.bf16.mxu0 0
    %68 = vmatpush1.bf16.msra.mxu0 0
    %69 = vmatprep.subr.bf16.mxu0 0
    %70 = vmatpush1.bf16.msra.mxu0 0
    %71 = vmatprep.subr.bf16.mxu0 0
    %72 = vmatpush1.bf16.msra.mxu0 0
    %73 = vmatprep.subr.bf16.mxu0 0
    %74 = vmatpush1.bf16.msra.mxu0 0
    %75 = vmatprep.subr.bf16.mxu0 0
    %76 = vmatpush1.bf16.msra.mxu0 %v56
    %77 = vmatprep.subr.bf16.mxu0 0
    %78 = vmatpush1.bf16.msra.mxu0 %v55
    %79 = vmatprep.subr.bf16.mxu0 0
    %80 = vmatpush2.bf16.msra.mxu0 0
    %81 = vmatprep.subr.bf16.mxu0 0
    %82 = vmatpush2.bf16.msra.mxu0 0
    %83 = vmatprep.subr.bf16.mxu0 0
    %84 = vmatpush2.bf16.msra.mxu0 0
    %85 = vmatprep.subr.bf16.mxu0 0
    %86 = vmatpush2.bf16.msra.mxu0 0
    %87 = vmatprep.subr.bf16.mxu0 0
    %88 = vmatpush2.bf16.msra.mxu0 0
    %89 = vmatprep.subr.bf16.mxu0 0
    %90 = vmatpush2.bf16.msra.mxu0 0
    %91 = vmatprep.subr.bf16.mxu0 0
    %92 = vmatpush2.bf16.msra.mxu0 0
    %93 = vmatprep.subr.bf16.mxu0 0
    %94 = vmatpush2.bf16.msra.mxu0 0
    %95 = vmatprep.mubr.bf16.mxu0 0
    %96 = vmatmul.mubr.bf16.gmra.mxu0 %v61
    %v97 = vpop.f32.mrf.mxu0
    %v98 = vadd.f32 %v40, %v97
    %v99 = vpop.f32.mrf.mxu0
    %v100 = vpop.f32.mrf.mxu0
    %v101 = vadd.f32 %v40, %v100
    %v102 = vpop.f32.mrf.mxu0
    %103 = vdwg.mxu0
    %v104 = vmul.f32 %v98, %v98
    %v105 = vmul.f32 %v101, %v101
    %v106 = vmul.f32 %v98, %v104
    %v107 = vmul.f32 %v101, %v105
    %v108 = vmul.f32 %v106, 0.044715
    %v109 = vmul.f32 %v107, 0.044715
    %v110 = vadd.f32 %v98, %v108
    %v111 = vadd.f32 %v101, %v109
    %v112 = vmul.f32 %v110, 0.7978846
    %v113 = vmul.f32 %v111, 0.7978846
    %v114 = vtanh.pop %v112
    %v115 = vtanh.pop %v113
    %v116 = vadd.f32 %v114, 1.0
    %v117 = vadd.f32 %v115, 1.0
    %v118 = vmul.f32 %v116, 0.5
    %v119 = vmul.f32 %v117, 0.5
    %v120 = vmul.f32 %v98, %v118
    %v121 = vmul.f32 %v101, %v119
    %v122 = vld [vmem:[#allocation2] sm:$0xff]
    %v123 = vld [vmem:[#allocation2 + $0x8] sm:$0xff]
    %v124 = vpack.c.bf16 %v121, %v120
    %v125 = vld [vmem:[%s3] sm:$0xf]
    %v126 = vld [vmem:[%s3 + $0x4] sm:$0xf]
    %v127 = vld [vmem:[%s3 + $0x8] sm:$0xf]
    %v128 = vld [vmem:[%s3 + $0xc] sm:$0xf]
    %v129 = vld [vmem:[%s3 + $0x10] sm:$0xf]
    %v130 = vld [vmem:[%s3 + $0x14] sm:$0xf]
    %v131 = vld [vmem:[%s3 + $0x18] sm:$0xf]
    %v132 = vld [vmem:[%s3 + $0x1c] sm:$0xf]
    %v141 = vunpack.c.l.b16 %v125
    %v142 = vunpack.c.l.b16 %v126
    %v143 = vunpack.c.l.b16 %v127
    %v144 = vunpack.c.l.b16 %v128
    %v145 = vunpack.c.l.b16 %v129
    %v146 = vunpack.c.l.b16 %v130
    %v147 = vunpack.c.l.b16 %v131
    %v148 = vunpack.c.l.b16 %v132
    %v149 = vpack.c.b16 %v142, %v141
    %v150 = vpack.c.b16 %v144, %v143
    %v151 = vpack.c.b16 %v146, %v145
    %v152 = vpack.c.b16 %v148, %v147
    %vm157 = vcmask 523264
    %v159 = vsel %vm157, %v124, 0
    %161 = vmatprep.subr.bf16.mxu0 0
    %162 = vmatpush1.bf16.msra.mxu0 0
    %163 = vmatprep.subr.bf16.mxu0 0
    %164 = vmatpush1.bf16.msra.mxu0 0
    %165 = vmatprep.subr.bf16.mxu0 0
    %166 = vmatpush1.bf16.msra.mxu0 0
    %167 = vmatprep.subr.bf16.mxu0 0
    %168 = vmatpush1.bf16.msra.mxu0 0
    %169 = vmatprep.subr.bf16.mxu0 0
    %170 = vmatpush1.bf16.msra.mxu0 %v152
    %171 = vmatprep.subr.bf16.mxu0 0
    %172 = vmatpush1.bf16.msra.mxu0 %v151
    %173 = vmatprep.subr.bf16.mxu0 0
    %174 = vmatpush1.bf16.msra.mxu0 %v150
    %175 = vmatprep.subr.bf16.mxu0 0
    %176 = vmatpush1.bf16.msra.mxu0 %v149
    %177 = vmatprep.subr.bf16.mxu0 0
    %178 = vmatpush2.bf16.msra.mxu0 0
    %179 = vmatprep.subr.bf16.mxu0 0
    %180 = vmatpush2.bf16.msra.mxu0 0
    %181 = vmatprep.subr.bf16.mxu0 0
    %182 = vmatpush2.bf16.msra.mxu0 0
    %183 = vmatprep.subr.bf16.mxu0 0
    %184 = vmatpush2.bf16.msra.mxu0 0
    %185 = vmatprep.subr.bf16.mxu0 0
    %186 = vmatpush2.bf16.msra.mxu0 0
    %187 = vmatprep.subr.bf16.mxu0 0
    %188 = vmatpush2.bf16.msra.mxu0 0
    %189 = vmatprep.subr.bf16.mxu0 0
    %190 = vmatpush2.bf16.msra.mxu0 0
    %191 = vmatprep.subr.bf16.mxu0 0
    %192 = vmatpush2.bf16.msra.mxu0 0
    %193 = vmatprep.mubr.bf16.mxu0 0
    %194 = vmatmul.mubr.bf16.gmra.mxu0 %v159
    %v195 = vpop.f32.mrf.mxu0
    %v196 = vadd.f32 0.0, %v195
    %v197 = vpop.f32.mrf.mxu0
    %v198 = vpop.f32.mrf.mxu0
    %v199 = vadd.f32 0.0, %v198
    %v200 = vpop.f32.mrf.mxu0
    %201 = vdwg.mxu0
    %v202 = vadd.f32 %v122, %v196
    %v203 = vadd.f32 %v123, %v199
    %204 = vst.msk [vmem:[#allocation2] sm:$0xff] %vm59, %v202
    %205 = vst.msk [vmem:[#allocation2 + $0x8] sm:$0xff] %vm59, %v203
    // Predicated region
    $region26: #{tpu_custom_call.1} parent=1 // pred_check
      %p206 = pneg %p22
    $region27: #{tpu_custom_call.1} parent=1 // pred_check_branch
      %208 = sbr.rel (%p206) target = $region29
    $region28: #{tpu_custom_call.1} parent=1 // pred_region
      %v209 = vld [vmem:[#allocation2] sm:$0xff]
      %v210 = vld [vmem:[#allocation2 + $0x8] sm:$0xff]
      %v211 = vld [vmem:[%s4] sm:$0x1]
      %v213 = vlaneseq
      %v214 = vshrl.u32 %v213, 7
      %v215 = vsub.s32 0, %v214
      %v216 = vrot.slane %v211, %v215
      %v218 = vadd.f32 %v209, %v216
      %v219 = vadd.f32 %v210, %v216
      %220 = vst.msk [vmem:[#allocation2] sm:$0xff] %vm59, %v218
      %221 = vst.msk [vmem:[#allocation2 + $0x8] sm:$0xff] %vm59, %v219
    $region29: #{tpu_custom_call.1} parent=1 // pred_fallthru
      _
    // Predicated region
    $region30: #{tpu_custom_call.1} parent=1 // pred_check
      _
    $region31: #{tpu_custom_call.1} parent=1 // pred_check_branch
      %223 = sbr.rel (0) target = $region33
    $region32: #{tpu_custom_call.1} parent=1 // pred_region
      %s225 = ssub.s32 256, 256
      %226 = vsyncadd [#allocation3], %s225
      %s227 = sshll.u32 [#allocation2], 4
      %s228 = int_to_ptr.vmem [resolvable:$true] %s227
      %233 = dma.vmem_to_hbm [thread:$0]  %s228, 256, %s5, [#allocation3], 128, 128, 8
    $region33: #{tpu_custom_call.1} parent=1 // pred_fallthru
      _
    // Predicated region
    $region34: #{tpu_custom_call.1} parent=1 // pred_check
      _
    $region35: #{tpu_custom_call.1} parent=1 // pred_check_branch
      %235 = sbr.rel (0) target = $region37
    $region36: #{tpu_custom_call.1} parent=1 // pred_region
      %236 = dma.done [#allocation3], 256
    $region37: #{tpu_custom_call.1} parent=1 // pred_fallthru
      _
    %237 = vsyncpa [#allocation3], 1

</llo_original>
